<compile_context>
chip_gen: v7x
topology: tpu7x:2x2x1
jax: 0.10.0
libtpu: 0.0.40
codegen_flags: <defaults>
</compile_context>

<pallas_src>
import functools
import math

import jax
import jax.numpy as jnp
from jax.experimental import pallas as pl
from jax.experimental.pallas import tpu as pltpu


# --------------------------- fused attention kernel ----------------------- #
def _mha_kernel(x_ref, wq_ref, wk_ref, wv_ref, wo_ref, bo_ref,
                o_ref, acc_ref, *, scale):
    h = pl.program_id(1)

    @pl.when(h == 0)
    def _():
        acc_ref[...] = jnp.zeros_like(acc_ref)

    x = x_ref[...]                                               # (N, D)

    # per-head projections (MXU, f32 accumulate)
    q = jnp.dot(x, wq_ref[...], preferred_element_type=jnp.float32) * scale
    k = jnp.dot(x, wk_ref[...], preferred_element_type=jnp.float32)
    v = jnp.dot(x, wv_ref[...], preferred_element_type=jnp.float32)

    # dots[i, j] = sum_d q[i, d] * k[j, d]  ==  q @ k^T  (no explicit transpose)
    dots = jax.lax.dot_general(
        q, k, dimension_numbers=(((1,), (1,)), ((), ())),
        preferred_element_type=jnp.float32)                      # (N, N)

    # numerically stable softmax along the key axis
    m = jnp.max(dots, axis=-1, keepdims=True)
    e = jnp.exp(dots - m)
    s = jnp.sum(e, axis=-1, keepdims=True)
    attn = e / s

    out_h = jnp.dot(attn, v, preferred_element_type=jnp.float32)  # (N, dh)

    # output projection decomposed per head:  out = sum_h out_h @ Wout_h
    acc_ref[...] = acc_ref[...] + jnp.dot(
        out_h, wo_ref[...], preferred_element_type=jnp.float32)

    @pl.when(h == pl.num_programs(1) - 1)
    def _():
        o_ref[...] = (acc_ref[...] + bo_ref[...]).astype(o_ref.dtype)


def attention_forward(x, w_qkv, w_out, b_out, *, heads, dim_head):
    """x: (B, N, dim); w_qkv: (3*inner, dim) torch layout; w_out: (dim, inner);
    b_out: (dim,).  Returns (B, N, dim)."""
    b, n, dim = x.shape
    inner = heads * dim_head
    assert w_qkv.shape == (3 * inner, dim)
    assert w_out.shape == (dim, inner)
    scale = dim_head ** -0.5
    # `project_out` is True for the default (heads=8, dim_head=64) config;
    # a heads==1 / dim_head==dim Identity to_out can be emulated by passing
    # w_out = eye(dim), b_out = 0.

    # Pre-slice the torch-layout weights per head (pure layout glue, no math):
    #   q uses columns [0:inner] of W_qkv^T, k the next inner, v the last.
    wt = w_qkv.T                                                  # (dim, 3*inner)
    per_head = lambda w: w.reshape(dim, heads, dim_head).transpose(1, 0, 2)
    wq = per_head(wt[:, :inner])                                  # (H, dim, dh)
    wk = per_head(wt[:, inner:2 * inner])                         # (H, dim, dh)
    wv = per_head(wt[:, 2 * inner:])                              # (H, dim, dh)
    wo = w_out.T.reshape(heads, dim_head, dim)                    # (H, dh, dim)
    bo = b_out.reshape(1, dim)

    kernel = functools.partial(_mha_kernel, scale=scale)
    grid_spec = pltpu.PrefetchScalarGridSpec(
        num_scalar_prefetch=0,
        grid=(b, heads),
        in_specs=[
            pl.BlockSpec((None, n, dim), lambda bi, hi: (bi, 0, 0)),      # x
            pl.BlockSpec((None, dim, dim_head), lambda bi, hi: (hi, 0, 0)),  # Wq
            pl.BlockSpec((None, dim, dim_head), lambda bi, hi: (hi, 0, 0)),  # Wk
            pl.BlockSpec((None, dim, dim_head), lambda bi, hi: (hi, 0, 0)),  # Wv
            pl.BlockSpec((None, dim_head, dim), lambda bi, hi: (hi, 0, 0)),  # Wo
            pl.BlockSpec((1, dim), lambda bi, hi: (0, 0)),                   # b_out
        ],
        out_specs=pl.BlockSpec((None, n, dim), lambda bi, hi: (bi, 0, 0)),
        scratch_shapes=[pltpu.VMEM((n, dim), jnp.float32)],
    )
    return pl.pallas_call(
        kernel,
        out_shape=jax.ShapeDtypeStruct((b, n, dim), x.dtype),
        grid_spec=grid_spec,
        compiler_params=pltpu.CompilerParams(
            dimension_semantics=("parallel", "arbitrary")),
    )(x, wq, wk, wv, wo, bo)


# ------------------------------ pure-JAX reference ------------------------ #
def attention_ref(x, w_qkv, w_out, b_out, heads, dim_head):
    b, n, dim = x.shape
    inner = heads * dim_head
    qkv = jnp.einsum("bnd,ed->bne", x, w_qkv, precision="highest")
    q, k, v = jnp.split(qkv, 3, axis=-1)
    to_heads = lambda t: t.reshape(b, n, heads, dim_head).transpose(0, 2, 1, 3)
    q, k, v = map(to_heads, (q, k, v))
    dots = jnp.einsum("bhid,bhjd->bhij", q, k, precision="highest") * dim_head ** -0.5
    attn = jax.nn.softmax(dots, axis=-1)
    out = jnp.einsum("bhij,bhjd->bhid", attn, v, precision="highest")
    out = out.transpose(0, 2, 1, 3).reshape(b, n, inner)
    return jnp.einsum("bni,di->bnd", out, w_out, precision="highest") + b_out


# ------------------------------------ demo -------------------------------- #
if __name__ == "__main__":
    B, N, DIM = 2, 16, 32          # small shapes; N mult of 8 (sublane aligned)
    HEADS, DIM_HEAD = 8, 16        # inner_dim = 128 (lane aligned)
    INNER = HEADS * DIM_HEAD

    key = jax.random.PRNGKey(0)
    kx, kq, ko, kb = jax.random.split(key, 4)
    x = jax.random.normal(kx, (B, N, DIM), jnp.float32)
    w_qkv = jax.random.normal(kq, (3 * INNER, DIM), jnp.float32) / math.sqrt(DIM)
    w_out = jax.random.normal(ko, (DIM, INNER), jnp.float32) / math.sqrt(INNER)
    b_out = jax.random.normal(kb, (DIM,), jnp.float32) * 0.02

    fwd = jax.jit(functools.partial(attention_forward,
                                    heads=HEADS, dim_head=DIM_HEAD))
    y = fwd(x, w_qkv, w_out, b_out)
    jax.block_until_ready(y)

    ref = attention_ref(x, w_qkv, w_out, b_out, HEADS, DIM_HEAD)
    assert y.shape == (B, N, DIM) and y.dtype == jnp.float32
    assert bool(jnp.all(jnp.isfinite(y)))
    assert bool(jnp.allclose(y, ref, atol=1e-3, rtol=1e-3)), \
        float(jnp.max(jnp.abs(y - ref)))
    print("KERNEL_OK")
</pallas_src>

<mosaic_0001>
module attributes {stable_mosaic.version = 11 : i64} {
  func.func @_mha_kernel(%arg0: i32, %arg1: i32, %arg2: memref<1x16x32xf32, #tpu.memory_space<vmem>>, %arg3: memref<1x32x16xf32, #tpu.memory_space<vmem>>, %arg4: memref<1x32x16xf32, #tpu.memory_space<vmem>>, %arg5: memref<1x32x16xf32, #tpu.memory_space<vmem>>, %arg6: memref<1x16x32xf32, #tpu.memory_space<vmem>>, %arg7: memref<1x32xf32, #tpu.memory_space<vmem>>, %arg8: memref<1x16x32xf32, #tpu.memory_space<vmem>>, %arg9: memref<16x32xf32, #tpu.memory_space<vmem>>) attributes {dimension_semantics = [#tpu.dimension_semantics<parallel>, #tpu.dimension_semantics<arbitrary>], iteration_bounds = array<i64: 2, 8>, scalar_prefetch = 0 : i64, scratch_operands = 1 : i64, tpu.core_type = #tpu.core_type<tc>, window_params = [{transform_indices = @transform_0, window_bounds = array<i64: 1, 16, 32>}, {transform_indices = @transform_1, window_bounds = array<i64: 1, 32, 16>}, {transform_indices = @transform_2, window_bounds = array<i64: 1, 32, 16>}, {transform_indices = @transform_3, window_bounds = array<i64: 1, 32, 16>}, {transform_indices = @transform_4, window_bounds = array<i64: 1, 16, 32>}, {pipeline_mode = #tpu.pipeline_mode<synchronous>, transform_indices = @transform_5, window_bounds = array<i64: 1, 32>}, {transform_indices = @transform_6, window_bounds = array<i64: 1, 16, 32>}]} {
    %c0_i32 = arith.constant 0 : i32
    %0 = arith.cmpi eq, %arg1, %c0_i32 : i32
    %1 = arith.extui %0 : i1 to i32
    %c0_i32_0 = arith.constant 0 : i32
    %2 = arith.cmpi ne, %1, %c0_i32_0 : i32
    scf.if %2 {
      %cst_28 = arith.constant 0.000000e+00 : f32
      %36 = vector.broadcast %cst_28 : f32 to vector<16x32xf32>
      %c0_29 = arith.constant 0 : index
      %c0_30 = arith.constant 0 : index
      %37 = vector.load %arg9[%c0_29, %c0_30] : memref<16x32xf32, #tpu.memory_space<vmem>>, vector<16x32xf32>
      tpu.vector_store %arg9[%c0_29, %c0_30], %36 {strides = array<i32>} : memref<16x32xf32, #tpu.memory_space<vmem>>, vector<16x32xf32>,
    } else {
    }
    %c0 = arith.constant 0 : index
    %c0_1 = arith.constant 0 : index
    %c0_2 = arith.constant 0 : index
    %3 = vector.load %arg2[%c0, %c0_1, %c0_2] : memref<1x16x32xf32, #tpu.memory_space<vmem>>, vector<1x16x32xf32>
    %4 = vector.shape_cast %3 : vector<1x16x32xf32> to vector<16x32xf32>
    %c0_3 = arith.constant 0 : index
    %c0_4 = arith.constant 0 : index
    %c0_5 = arith.constant 0 : index
    %5 = vector.load %arg3[%c0_3, %c0_4, %c0_5] : memref<1x32x16xf32, #tpu.memory_space<vmem>>, vector<1x32x16xf32>
    %6 = vector.shape_cast %5 : vector<1x32x16xf32> to vector<32x16xf32>
    %cst = arith.constant dense<0.000000e+00> : vector<16x16xf32>
    %7 = tpu.matmul %4, %6, %cst {dimension_numbers = #tpu.dot_dimension_numbers<[1], [0], [0], [1], [0, 0, 1, 1], [], []>} : vector<16x32xf32>, vector<32x16xf32>, vector<16x16xf32> -> vector<16x16xf32>
    %cst_6 = arith.constant 2.500000e-01 : f32
    %8 = vector.broadcast %cst_6 : f32 to vector<16x16xf32>
    %9 = arith.mulf %7, %8 : vector<16x16xf32>
    %c0_7 = arith.constant 0 : index
    %c0_8 = arith.constant 0 : index
    %c0_9 = arith.constant 0 : index
    %10 = vector.load %arg4[%c0_7, %c0_8, %c0_9] : memref<1x32x16xf32, #tpu.memory_space<vmem>>, vector<1x32x16xf32>
    %11 = vector.shape_cast %10 : vector<1x32x16xf32> to vector<32x16xf32>
    %cst_10 = arith.constant dense<0.000000e+00> : vector<16x16xf32>
    %12 = tpu.matmul %4, %11, %cst_10 {dimension_numbers = #tpu.dot_dimension_numbers<[1], [0], [0], [1], [0, 0, 1, 1], [], []>} : vector<16x32xf32>, vector<32x16xf32>, vector<16x16xf32> -> vector<16x16xf32>
    %c0_11 = arith.constant 0 : index
    %c0_12 = arith.constant 0 : index
    %c0_13 = arith.constant 0 : index
    %13 = vector.load %arg5[%c0_11, %c0_12, %c0_13] : memref<1x32x16xf32, #tpu.memory_space<vmem>>, vector<1x32x16xf32>
    %14 = vector.shape_cast %13 : vector<1x32x16xf32> to vector<32x16xf32>
    %cst_14 = arith.constant dense<0.000000e+00> : vector<16x16xf32>
    %15 = tpu.matmul %4, %14, %cst_14 {dimension_numbers = #tpu.dot_dimension_numbers<[1], [0], [0], [1], [0, 0, 1, 1], [], []>} : vector<16x32xf32>, vector<32x16xf32>, vector<16x16xf32> -> vector<16x16xf32>
    %cst_15 = arith.constant dense<0.000000e+00> : vector<16x16xf32>
    %16 = tpu.matmul %9, %12, %cst_15 {dimension_numbers = #tpu.dot_dimension_numbers<[1], [1], [0], [0], [0, 0, 1, 0], [], []>} : vector<16x16xf32>, vector<16x16xf32>, vector<16x16xf32> -> vector<16x16xf32>
    %cst_16 = arith.constant dense<0xFF800000> : vector<16xf32>
    %17 = vector.multi_reduction <maximumf>, %16, %cst_16 [1] : vector<16x16xf32> to vector<16xf32>
    %18 = vector.shape_cast %17 : vector<16xf32> to vector<16x1xf32>
    %19 = vector.broadcast %18 : vector<16x1xf32> to vector<16x16xf32>
    %20 = arith.subf %16, %19 : vector<16x16xf32>
    %21 = math.exp %20 : vector<16x16xf32>
    %cst_17 = arith.constant dense<0.000000e+00> : vector<16xf32>
    %22 = vector.multi_reduction <add>, %21, %cst_17 [1] : vector<16x16xf32> to vector<16xf32>
    %23 = vector.shape_cast %22 : vector<16xf32> to vector<16x1xf32>
    %24 = vector.broadcast %23 : vector<16x1xf32> to vector<16x16xf32>
    %25 = arith.divf %21, %24 : vector<16x16xf32>
    %cst_18 = arith.constant dense<0.000000e+00> : vector<16x16xf32>
    %26 = tpu.matmul %25, %15, %cst_18 {dimension_numbers = #tpu.dot_dimension_numbers<[1], [0], [0], [1], [0, 0, 1, 1], [], []>} : vector<16x16xf32>, vector<16x16xf32>, vector<16x16xf32> -> vector<16x16xf32>
    %c0_19 = arith.constant 0 : index
    %c0_20 = arith.constant 0 : index
    %27 = vector.load %arg9[%c0_19, %c0_20] : memref<16x32xf32, #tpu.memory_space<vmem>>, vector<16x32xf32>
    %c0_21 = arith.constant 0 : index
    %c0_22 = arith.constant 0 : index
    %c0_23 = arith.constant 0 : index
    %28 = vector.load %arg6[%c0_21, %c0_22, %c0_23] : memref<1x16x32xf32, #tpu.memory_space<vmem>>, vector<1x16x32xf32>
    %29 = vector.shape_cast %28 : vector<1x16x32xf32> to vector<16x32xf32>
    %cst_24 = arith.constant dense<0.000000e+00> : vector<16x32xf32>
    %30 = tpu.matmul %26, %29, %cst_24 {dimension_numbers = #tpu.dot_dimension_numbers<[1], [0], [0], [1], [0, 0, 1, 1], [], []>} : vector<16x16xf32>, vector<16x32xf32>, vector<16x32xf32> -> vector<16x32xf32>
    %31 = arith.addf %27, %30 : vector<16x32xf32>
    %c0_25 = arith.constant 0 : index
    %c0_26 = arith.constant 0 : index
    %32 = vector.load %arg9[%c0_25, %c0_26] : memref<16x32xf32, #tpu.memory_space<vmem>>, vector<16x32xf32>
    tpu.vector_store %arg9[%c0_25, %c0_26], %31 {strides = array<i32>} : memref<16x32xf32, #tpu.memory_space<vmem>>, vector<16x32xf32>,
    %c7_i32 = arith.constant 7 : i32
    %33 = arith.cmpi eq, %arg1, %c7_i32 : i32
    %34 = arith.extui %33 : i1 to i32
    %c0_i32_27 = arith.constant 0 : i32
    %35 = arith.cmpi ne, %34, %c0_i32_27 : i32
    scf.if %35 {
      %c0_28 = arith.constant 0 : index
      %c0_29 = arith.constant 0 : index
      %36 = vector.load %arg9[%c0_28, %c0_29] : memref<16x32xf32, #tpu.memory_space<vmem>>, vector<16x32xf32>
      %c0_30 = arith.constant 0 : index
      %c0_31 = arith.constant 0 : index
      %37 = vector.load %arg7[%c0_30, %c0_31] : memref<1x32xf32, #tpu.memory_space<vmem>>, vector<1x32xf32>
      %38 = vector.broadcast %37 : vector<1x32xf32> to vector<16x32xf32>
      %39 = arith.addf %36, %38 : vector<16x32xf32>
      %c0_32 = arith.constant 0 : index
      %c0_33 = arith.constant 0 : index
      %c0_34 = arith.constant 0 : index
      %40 = vector.load %arg8[%c0_32, %c0_33, %c0_34] : memref<1x16x32xf32, #tpu.memory_space<vmem>>, vector<1x16x32xf32>
      %41 = vector.shape_cast %40 : vector<1x16x32xf32> to vector<16x32xf32>
      %42 = vector.shape_cast %39 : vector<16x32xf32> to vector<1x16x32xf32>
      tpu.vector_store %arg8[%c0_32, %c0_33, %c0_34], %42 {strides = array<i32>} : memref<1x16x32xf32, #tpu.memory_space<vmem>>, vector<1x16x32xf32>,
    } else {
    }
    return
  }
  func.func @transform_0(%arg0: i32, %arg1: i32) -> (i32, i32, i32) {
    %c0_i32 = arith.constant 0 : i32
    %c0_i32_0 = arith.constant 0 : i32
    %c0_i32_1 = arith.constant 0 : i32
    return %arg0, %c0_i32, %c0_i32_0 : i32, i32, i32
  }
  func.func @transform_1(%arg0: i32, %arg1: i32) -> (i32, i32, i32) {
    %c0_i32 = arith.constant 0 : i32
    %c0_i32_0 = arith.constant 0 : i32
    %c0_i32_1 = arith.constant 0 : i32
    return %arg1, %c0_i32, %c0_i32_0 : i32, i32, i32
  }
  func.func @transform_2(%arg0: i32, %arg1: i32) -> (i32, i32, i32) {
    %c0_i32 = arith.constant 0 : i32
    %c0_i32_0 = arith.constant 0 : i32
    %c0_i32_1 = arith.constant 0 : i32
    return %arg1, %c0_i32, %c0_i32_0 : i32, i32, i32
  }
  func.func @transform_3(%arg0: i32, %arg1: i32) -> (i32, i32, i32) {
    %c0_i32 = arith.constant 0 : i32
    %c0_i32_0 = arith.constant 0 : i32
    %c0_i32_1 = arith.constant 0 : i32
    return %arg1, %c0_i32, %c0_i32_0 : i32, i32, i32
  }
  func.func @transform_4(%arg0: i32, %arg1: i32) -> (i32, i32, i32) {
    %c0_i32 = arith.constant 0 : i32
    %c0_i32_0 = arith.constant 0 : i32
    %c0_i32_1 = arith.constant 0 : i32
    return %arg1, %c0_i32, %c0_i32_0 : i32, i32, i32
  }
  func.func @transform_5(%arg0: i32, %arg1: i32) -> (i32, i32) {
    %c0_i32 = arith.constant 0 : i32
    %c0_i32_0 = arith.constant 0 : i32
    %c0_i32_1 = arith.constant 0 : i32
    return %c0_i32, %c0_i32_0 : i32, i32
  }
  func.func @transform_6(%arg0: i32, %arg1: i32) -> (i32, i32, i32) {
    %c0_i32 = arith.constant 0 : i32
    %c0_i32_0 = arith.constant 0 : i32
    %c0_i32_1 = arith.constant 0 : i32
    return %arg0, %c0_i32, %c0_i32_0 : i32, i32, i32
  }
}

</mosaic_0001>

<llo_original>
// kernel: attention_forward.1
$region0: #{attention_forward.1}
  #allocation0 [shape = 'u32[]', space=smem, size = 0x4, offset = 0x4, fixed_abs, tag = 'smem constant byte address 0x4 - core index']
  #allocation1 [shape = 'u32[144,128]{1,0:T(1,128)}', space=vmem, size = 0x12000, scoped, tag = 'internal scratch']
  #allocation2 [shape = 'f32[16,32]{1,0:T(8,128)}', space=vmem, size = 0x2000, scoped, tag = 'scratch operand']
  %s0 = inlined_call_operand.vmem [shape: f32[2,16,32], index: 0, kind: input, shape index: {}]
  %s1 = inlined_call_operand.vmem [shape: f32[8,32,16], index: 1, kind: input, shape index: {}]
  %s2 = inlined_call_operand.vmem [shape: f32[8,32,16], index: 2, kind: input, shape index: {}]
  %s3 = inlined_call_operand.vmem [shape: f32[8,32,16], index: 3, kind: input, shape index: {}]
  %s4 = inlined_call_operand.vmem [shape: f32[8,16,32], index: 4, kind: input, shape index: {}]
  %s5 = inlined_call_operand.vmem [shape: f32[1,32], index: 5, kind: input, shape index: {}]
  %s6 = inlined_call_operand.hbm [shape: f32[2,16,32], index: 6, kind: output, shape index: {}]
  %s7 = sld [smem:[#allocation0]]
  $region65: #{attention_forward.1} parent=0
    _
  %s9 = ssub.s32 1, %s7
  %s10 = scalar_select 0, %s9, %s7
  $region1: #{attention_forward.1} parent=0
    #allocation3 [shape = 'u8[16384]{0}', space=vmem, size = 0x4000, scoped, tag = 'output window, operand 0']
    #allocation4 [shape = 's32[2]{0}', space=sflag, size = 0x8, scoped, tag = 'scoped memory for attention_forward.1']
    %11 = vsyncpa [#allocation4], 0
    %s12 = scalar_lea.sflag [#allocation4], 1
    %13 = vsyncpa %s12, 0
    loop: start=0, step=1, limit=18
    $region2: #{attention_forward.1} parent=1 // loop_pre_header
      _
    $region3: #{attention_forward.1} parent=1 // loop_header
      %s15 = sphi 0, %s19
      %p16 = scmp.ge.s32.totalorder %s15, 18
      %s22 = sphi 0, %s34
      %s23 = sphi 0, %s30
      %s24 = sphi 0, %s22
      %s25 = sphi 0, %s23
      %s26 = sphi 0, %s24
      %s27 = sphi 0, %s25
      %s37 = sphi 0, %s39
      %s40 = sphi 0, %s37
      %s41 = sphi 0, %s40
      %s57 = sphi 0, %s41
      %s63 = sphi 0, %s65
      %s66 = sphi 0, %s63
      %s67 = sphi 0, %s66
      %s83 = sphi 0, %s67
      %s89 = sphi 0, %s91
      %s92 = sphi 0, %s89
      %s93 = sphi 0, %s92
      %s109 = sphi 0, %s93
      %s115 = sphi 0, %s117
      %s118 = sphi 0, %s115
      %s119 = sphi 0, %s118
      %s135 = sphi 0, %s119
      %s141 = sphi 0, %s143
      %s144 = sphi 0, %s141
      %s145 = sphi 0, %s144
      %s161 = sphi 0, %s145
      %s165 = sphi 0, %s165
      %s167 = sphi 0, %s165
      %s168 = sphi 0, %s167
      %s182 = sphi 0, %s168
      %s188 = sphi 0, %s190
      %s191 = sphi 0, %s188
      %s192 = sphi 0, %s191
      %s208 = sphi 0, %s192
    $region4: #{attention_forward.1} parent=1 // loop_header_branch
      %18 = sbr.rel (%p16) target = $region8
    $region5: #{attention_forward.1} parent=1 // loop_body
      %s20 = ssub.s32 %s15, 1
      %s21 = ssub.s32 %s15, 2
      %s28 = sadd.s32 1, %s23
      %p29 = scmp.ge.s32.totalorder %s28, 8
      %s30 = scalar_select %p29, 0, %s28
      %s31 = sadd.s32 1, %s22
      %s32 = scalar_select %p29, %s31, %s22
      %p33 = scmp.ge.s32.totalorder %s32, 2
      %s34 = scalar_select %p33, 0, %s32
      %s35 = ssub.s32 %s22, %s34
      %p36 = scmp.eq.s32.totalorder %s35, 0
      %s38 = sadd.s32 %s37, 1
      %s39 = scalar_select %p36, %s37, %s38
      %p42 = pneg %p36
      %p43 = scmp.eq.s32.totalorder %s15, 15
      %p44 = por %p42, %p43
      %p45 = scmp.ne.s32.totalorder %s37, %s40
      %p46 = scmp.eq.s32.totalorder %s15, 0
      %p47 = por %p45, %p46
      %p48 = scmp.ne.s32.totalorder %s37, %s40
      %p49 = scmp.eq.s32.totalorder %s20, 15
      %p50 = por %p48, %p49
      %p51 = scmp.ne.s32.totalorder %s40, %s41
      %p52 = scmp.eq.s32.totalorder %s20, 0
      %p53 = por %p51, %p52
      %p54 = scmp.ne.s32.totalorder %s40, %s41
      %p55 = scmp.eq.s32.totalorder %s21, 15
      %p56 = por %p54, %p55
      %p58 = scmp.ne.s32.totalorder %s41, %s57
      %p59 = scmp.eq.s32.totalorder %s21, 0
      %p60 = por %p58, %p59
      %s61 = ssub.s32 %s23, %s30
      %p62 = scmp.eq.s32.totalorder %s61, 0
      %s64 = sadd.s32 %s63, 1
      %s65 = scalar_select %p62, %s63, %s64
      %p68 = pneg %p62
      %p69 = scmp.eq.s32.totalorder %s15, 15
      %p70 = por %p68, %p69
      %p71 = scmp.ne.s32.totalorder %s63, %s66
      %p72 = scmp.eq.s32.totalorder %s15, 0
      %p73 = por %p71, %p72
      %p74 = scmp.ne.s32.totalorder %s63, %s66
      %p75 = scmp.eq.s32.totalorder %s20, 15
      %p76 = por %p74, %p75
      %p77 = scmp.ne.s32.totalorder %s66, %s67
      %p78 = scmp.eq.s32.totalorder %s20, 0
      %p79 = por %p77, %p78
      %p80 = scmp.ne.s32.totalorder %s66, %s67
      %p81 = scmp.eq.s32.totalorder %s21, 15
      %p82 = por %p80, %p81
      %p84 = scmp.ne.s32.totalorder %s67, %s83
      %p85 = scmp.eq.s32.totalorder %s21, 0
      %p86 = por %p84, %p85
      %s87 = ssub.s32 %s23, %s30
      %p88 = scmp.eq.s32.totalorder %s87, 0
      %s90 = sadd.s32 %s89, 1
      %s91 = scalar_select %p88, %s89, %s90
      %p94 = pneg %p88
      %p95 = scmp.eq.s32.totalorder %s15, 15
      %p96 = por %p94, %p95
      %p97 = scmp.ne.s32.totalorder %s89, %s92
      %p98 = scmp.eq.s32.totalorder %s15, 0
      %p99 = por %p97, %p98
      %p100 = scmp.ne.s32.totalorder %s89, %s92
      %p101 = scmp.eq.s32.totalorder %s20, 15
      %p102 = por %p100, %p101
      %p103 = scmp.ne.s32.totalorder %s92, %s93
      %p104 = scmp.eq.s32.totalorder %s20, 0
      %p105 = por %p103, %p104
      %p106 = scmp.ne.s32.totalorder %s92, %s93
      %p107 = scmp.eq.s32.totalorder %s21, 15
      %p108 = por %p106, %p107
      %p110 = scmp.ne.s32.totalorder %s93, %s109
      %p111 = scmp.eq.s32.totalorder %s21, 0
      %p112 = por %p110, %p111
      %s113 = ssub.s32 %s23, %s30
      %p114 = scmp.eq.s32.totalorder %s113, 0
      %s116 = sadd.s32 %s115, 1
      %s117 = scalar_select %p114, %s115, %s116
      %p120 = pneg %p114
      %p121 = scmp.eq.s32.totalorder %s15, 15
      %p122 = por %p120, %p121
      %p123 = scmp.ne.s32.totalorder %s115, %s118
      %p124 = scmp.eq.s32.totalorder %s15, 0
      %p125 = por %p123, %p124
      %p126 = scmp.ne.s32.totalorder %s115, %s118
      %p127 = scmp.eq.s32.totalorder %s20, 15
      %p128 = por %p126, %p127
      %p129 = scmp.ne.s32.totalorder %s118, %s119
      %p130 = scmp.eq.s32.totalorder %s20, 0
      %p131 = por %p129, %p130
      %p132 = scmp.ne.s32.totalorder %s118, %s119
      %p133 = scmp.eq.s32.totalorder %s21, 15
      %p134 = por %p132, %p133
      %p136 = scmp.ne.s32.totalorder %s119, %s135
      %p137 = scmp.eq.s32.totalorder %s21, 0
      %p138 = por %p136, %p137
      %s139 = ssub.s32 %s23, %s30
      %p140 = scmp.eq.s32.totalorder %s139, 0
      %s142 = sadd.s32 %s141, 1
      %s143 = scalar_select %p140, %s141, %s142
      %p146 = pneg %p140
      %p147 = scmp.eq.s32.totalorder %s15, 15
      %p148 = por %p146, %p147
      %p149 = scmp.ne.s32.totalorder %s141, %s144
      %p150 = scmp.eq.s32.totalorder %s15, 0
      %p151 = por %p149, %p150
      %p152 = scmp.ne.s32.totalorder %s141, %s144
      %p153 = scmp.eq.s32.totalorder %s20, 15
      %p154 = por %p152, %p153
      %p155 = scmp.ne.s32.totalorder %s144, %s145
      %p156 = scmp.eq.s32.totalorder %s20, 0
      %p157 = por %p155, %p156
      %p158 = scmp.ne.s32.totalorder %s144, %s145
      %p159 = scmp.eq.s32.totalorder %s21, 15
      %p160 = por %p158, %p159
      %p162 = scmp.ne.s32.totalorder %s145, %s161
      %p163 = scmp.eq.s32.totalorder %s21, 0
      %p164 = por %p162, %p163
      %s166 = sadd.s32 %s165, 1
      %p169 = scmp.eq.s32.totalorder %s15, 15
      %p170 = scmp.ne.s32.totalorder %s165, %s167
      %p171 = scmp.eq.s32.totalorder %s15, 0
      %p172 = por %p170, %p171
      %p173 = scmp.ne.s32.totalorder %s165, %s167
      %p174 = scmp.eq.s32.totalorder %s20, 15
      %p175 = por %p173, %p174
      %p176 = scmp.ne.s32.totalorder %s167, %s168
      %p177 = scmp.eq.s32.totalorder %s20, 0
      %p178 = por %p176, %p177
      %p179 = scmp.ne.s32.totalorder %s167, %s168
      %p180 = scmp.eq.s32.totalorder %s21, 15
      %p181 = por %p179, %p180
      %p183 = scmp.ne.s32.totalorder %s168, %s182
      %p184 = scmp.eq.s32.totalorder %s21, 0
      %p185 = por %p183, %p184
      %s186 = ssub.s32 %s22, %s34
      %p187 = scmp.eq.s32.totalorder %s186, 0
      %s189 = sadd.s32 %s188, 1
      %s190 = scalar_select %p187, %s188, %s189
      %p193 = pneg %p187
      %p194 = scmp.eq.s32.totalorder %s15, 15
      %p195 = por %p193, %p194
      %p196 = scmp.ne.s32.totalorder %s188, %s191
      %p197 = scmp.eq.s32.totalorder %s15, 0
      %p198 = por %p196, %p197
      %p199 = scmp.ne.s32.totalorder %s188, %s191
      %p200 = scmp.eq.s32.totalorder %s20, 15
      %p201 = por %p199, %p200
      %p202 = scmp.ne.s32.totalorder %s191, %s192
      %p203 = scmp.eq.s32.totalorder %s20, 0
      %p204 = por %p202, %p203
      %p205 = scmp.ne.s32.totalorder %s191, %s192
      %p206 = scmp.eq.s32.totalorder %s21, 15
      %p207 = por %p205, %p206
      %p209 = scmp.ne.s32.totalorder %s192, %s208
      %p210 = scmp.eq.s32.totalorder %s21, 0
      %p211 = por %p209, %p210
      %p212 = scmp.le.s32.totalorder 1, %s15
      %p213 = scmp.lt.s32.totalorder %s15, 17
      %p214 = pnand %p212, %p213
      %p215 = pneg %p214
      // Predicated region
      $region9: #{attention_forward.1} parent=5 // pred_check
        _
      $region10: #{attention_forward.1} parent=5 // pred_check_branch
        %217 = sbr.rel (%p214) target = $region12
      $region11: #{attention_forward.1} parent=5 // pred_region
        %s218 = ssub.s32 %s15, 1
        // Predicated region
        $region13: #{attention_forward.1} parent=11 // pred_check
          %p219 = pneg %p178
        $region14: #{attention_forward.1} parent=11 // pred_check_branch
          %221 = sbr.rel (%p219) target = $region16
        $region15: #{attention_forward.1} parent=11 // pred_region
          _
        $region16: #{attention_forward.1} parent=11 // pred_fallthru
          _
      $region12: #{attention_forward.1} parent=5 // pred_fallthru
        _
      %p222 = scmp.lt.s32.totalorder %s15, 16
      // Predicated region
      $region17: #{attention_forward.1} parent=5 // pred_check
        %p223 = pneg %p222
      $region18: #{attention_forward.1} parent=5 // pred_check_branch
        %225 = sbr.rel (%p223) target = $region20
      $region19: #{attention_forward.1} parent=5 // pred_region
        // Predicated region
        $region21: #{attention_forward.1} parent=19 // pred_check
          %p226 = pneg %p47
        $region22: #{attention_forward.1} parent=19 // pred_check_branch
          %228 = sbr.rel (%p226) target = $region24
        $region23: #{attention_forward.1} parent=19 // pred_region
          %p229 = scmp.lt.s32.totalorder %s22, 1
          %s230 = scalar_select %p229, %s22, 1
          %s231 = smul.addr %s230, 2
          %s232 = smul.addr %s231, 8
          %s233 = scalar_lea.vmem %s0, %s232
        $region24: #{attention_forward.1} parent=19 // pred_fallthru
          _
        // Predicated region
        $region25: #{attention_forward.1} parent=19 // pred_check
          %p234 = pneg %p73
        $region26: #{attention_forward.1} parent=19 // pred_check_branch
          %236 = sbr.rel (%p234) target = $region28
        $region27: #{attention_forward.1} parent=19 // pred_region
          %p237 = scmp.lt.s32.totalorder %s23, 7
          %s238 = scalar_select %p237, %s23, 7
          %s239 = smul.addr %s238, 4
          %s240 = smul.addr %s239, 8
          %s241 = scalar_lea.vmem %s1, %s240
        $region28: #{attention_forward.1} parent=19 // pred_fallthru
          _
        // Predicated region
        $region29: #{attention_forward.1} parent=19 // pred_check
          %p242 = pneg %p99
        $region30: #{attention_forward.1} parent=19 // pred_check_branch
          %244 = sbr.rel (%p242) target = $region32
        $region31: #{attention_forward.1} parent=19 // pred_region
          %p245 = scmp.lt.s32.totalorder %s23, 7
          %s246 = scalar_select %p245, %s23, 7
          %s247 = smul.addr %s246, 4
          %s248 = smul.addr %s247, 8
          %s249 = scalar_lea.vmem %s2, %s248
        $region32: #{attention_forward.1} parent=19 // pred_fallthru
          _
        // Predicated region
        $region33: #{attention_forward.1} parent=19 // pred_check
          %p250 = pneg %p125
        $region34: #{attention_forward.1} parent=19 // pred_check_branch
          %252 = sbr.rel (%p250) target = $region36
        $region35: #{attention_forward.1} parent=19 // pred_region
          %p253 = scmp.lt.s32.totalorder %s23, 7
          %s254 = scalar_select %p253, %s23, 7
          %s255 = smul.addr %s254, 4
          %s256 = smul.addr %s255, 8
          %s257 = scalar_lea.vmem %s3, %s256
        $region36: #{attention_forward.1} parent=19 // pred_fallthru
          _
        // Predicated region
        $region37: #{attention_forward.1} parent=19 // pred_check
          %p258 = pneg %p151
        $region38: #{attention_forward.1} parent=19 // pred_check_branch
          %260 = sbr.rel (%p258) target = $region40
        $region39: #{attention_forward.1} parent=19 // pred_region
          %p261 = scmp.lt.s32.totalorder %s23, 7
          %s262 = scalar_select %p261, %s23, 7
          %s263 = smul.addr %s262, 2
          %s264 = smul.addr %s263, 8
          %s265 = scalar_lea.vmem %s4, %s264
        $region40: #{attention_forward.1} parent=19 // pred_fallthru
          _
      $region20: #{attention_forward.1} parent=5 // pred_fallthru
        _
      %p266 = scmp.le.s32.totalorder 1, %s15
      %p267 = scmp.lt.s32.totalorder %s15, 17
      %p268 = pnand %p266, %p267
      %p269 = pneg %p268
      // Predicated region
      $region41: #{attention_forward.1} parent=5 // pred_check
        _
      $region42: #{attention_forward.1} parent=5 // pred_check_branch
        %271 = sbr.rel (%p268) target = $region44
      $region43: #{attention_forward.1} parent=5 // pred_region
        %s272 = ssub.s32 %s15, 1
        %p273 = scmp.lt.s32.totalorder %s24, 1
        %s274 = scalar_select %p273, %s24, 1
        %s275 = smul.addr %s274, 2
        %s276 = smul.addr %s275, 8
        %s277 = scalar_lea.vmem %s0, %s276
        %p278 = pneg %p53
        %p279 = pneg %p50
        %p280 = scmp.lt.s32.totalorder %s25, 7
        %s281 = scalar_select %p280, %s25, 7
        %s282 = smul.addr %s281, 4
        %s283 = smul.addr %s282, 8
        %s284 = scalar_lea.vmem %s1, %s283
        %p285 = pneg %p79
        %p286 = pneg %p76
        %p287 = scmp.lt.s32.totalorder %s25, 7
        %s288 = scalar_select %p287, %s25, 7
        %s289 = smul.addr %s288, 4
        %s290 = smul.addr %s289, 8
        %s291 = scalar_lea.vmem %s2, %s290
        %p292 = pneg %p105
        %p293 = pneg %p102
        %p294 = scmp.lt.s32.totalorder %s25, 7
        %s295 = scalar_select %p294, %s25, 7
        %s296 = smul.addr %s295, 4
        %s297 = smul.addr %s296, 8
        %s298 = scalar_lea.vmem %s3, %s297
        %p299 = pneg %p131
        %p300 = pneg %p128
        %p301 = scmp.lt.s32.totalorder %s25, 7
        %s302 = scalar_select %p301, %s25, 7
        %s303 = smul.addr %s302, 2
        %s304 = smul.addr %s303, 8
        %s305 = scalar_lea.vmem %s4, %s304
        %p306 = pneg %p157
        %p307 = pneg %p154
        %p308 = pneg %p178
        %p309 = pneg %p175
        %p310 = pneg %p204
        %p311 = pneg %p201
        %s312 = sand.u32 %s191, 1
        %s313 = scalar_lea.sflag [#allocation4], %s312
        %s314 = sand.u32 %s191, 1
        %s315 = smul.addr %s314, 16
        %s316 = scalar_lea.vmem [#allocation3], %s315
        %p317 = scmp.lt.s32.totalorder %s24, 1
        %s318 = scalar_select %p317, %s24, 1
        %s319 = smul.addr %s318, 2
        %s320 = smul.addr %s319, 8
        %s321 = scalar_lea.vmem %s0, %s320
        %p322 = scmp.lt.s32.totalorder %s25, 7
        %s323 = scalar_select %p322, %s25, 7
        %s324 = smul.addr %s323, 4
        %s325 = smul.addr %s324, 8
        %s326 = scalar_lea.vmem %s1, %s325
        %p327 = scmp.lt.s32.totalorder %s25, 7
        %s328 = scalar_select %p327, %s25, 7
        %s329 = smul.addr %s328, 4
        %s330 = smul.addr %s329, 8
        %s331 = scalar_lea.vmem %s2, %s330
        %p332 = scmp.lt.s32.totalorder %s25, 7
        %s333 = scalar_select %p332, %s25, 7
        %s334 = smul.addr %s333, 4
        %s335 = smul.addr %s334, 8
        %s336 = scalar_lea.vmem %s3, %s335
        %p337 = scmp.lt.s32.totalorder %s25, 7
        %s338 = scalar_select %p337, %s25, 7
        %s339 = smul.addr %s338, 2
        %s340 = smul.addr %s339, 8
        %s341 = scalar_lea.vmem %s4, %s340
        %p342 = scmp.eq.s32.totalorder %s25, 0
        // Predicated region
        $region45: #{attention_forward.1} parent=43 // pred_check
          %p343 = pneg %p342
        $region46: #{attention_forward.1} parent=43 // pred_check_branch
          %345 = sbr.rel (%p343) target = $region48
        $region47: #{attention_forward.1} parent=43 // pred_region
          %vm346 = vcmask 261120
          %347 = vst.msk [vmem:[#allocation2] sm:$0xff] %vm346, 0.0
          %348 = vst.msk [vmem:[#allocation2 + $0x8] sm:$0xff] %vm346, 0.0
        $region48: #{attention_forward.1} parent=43 // pred_fallthru
          _
        %v349 = vld [vmem:[%s321] sm:$0xff]
        %v350 = vld [vmem:[%s321 + $0x8] sm:$0xff]
        %v351 = vld [vmem:[%s326] sm:$0xff]
        %v352 = vld [vmem:[%s326 + $0x8] sm:$0xff]
        %v353 = vld [vmem:[%s326 + $0x10] sm:$0xff]
        %v354 = vld [vmem:[%s326 + $0x18] sm:$0xff]
        %vm355 = vcmask 261120
        %v357 = vsel %vm355, %v349, 0
        %v360 = vsel %vm355, %v350, 0
        %362 = vmatprep.subr.mxu0 0.0
        %363 = vmatpush1.msra.mxu0 %v351
        %364 = vmatprep.subr.mxu0 0.0
        %365 = vmatpush1.msra.mxu0 %v352
        %366 = vmatprep.subr.mxu0 0.0
        %367 = vmatpush1.msra.mxu0 %v353
        %368 = vmatprep.subr.mxu0 0.0
        %369 = vmatpush1.msra.mxu0 %v354
        %370 = vmatprep.subr.mxu0 0.0
        %371 = vmatpush1.msra.mxu0 0.0
        %372 = vmatprep.subr.mxu0 0.0
        %373 = vmatpush1.msra.mxu0 0.0
        %374 = vmatprep.subr.mxu0 0.0
        %375 = vmatpush1.msra.mxu0 0.0
        %376 = vmatprep.subr.mxu0 0.0
        %377 = vmatpush1.msra.mxu0 0.0
        %378 = vmatprep.subr.mxu0 0.0
        %379 = vmatpush1.msra.mxu0 0.0
        %380 = vmatprep.subr.mxu0 0.0
        %381 = vmatpush1.msra.mxu0 0.0
        %382 = vmatprep.subr.mxu0 0.0
        %383 = vmatpush1.msra.mxu0 0.0
        %384 = vmatprep.subr.mxu0 0.0
        %385 = vmatpush1.msra.mxu0 0.0
        %386 = vmatprep.subr.mxu0 0.0
        %387 = vmatpush1.msra.mxu0 0.0
        %388 = vmatprep.subr.mxu0 0.0
        %389 = vmatpush1.msra.mxu0 0.0
        %390 = vmatprep.subr.mxu0 0.0
        %391 = vmatpush1.msra.mxu0 0.0
        %392 = vmatprep.subr.mxu0 0.0
        %393 = vmatpush1.msra.mxu0 0.0
        %394 = vmatprep.subr.mxu0 0.0
        %395 = vmatpush1.msra.mxu0 0.0
        %396 = vmatprep.subr.mxu0 0.0
        %397 = vmatpush1.msra.mxu0 0.0
        %398 = vmatprep.subr.mxu0 0.0
        %399 = vmatpush1.msra.mxu0 0.0
        %400 = vmatprep.subr.mxu0 0.0
        %401 = vmatpush1.msra.mxu0 0.0
        %402 = vmatprep.subr.mxu0 0.0
        %403 = vmatpush1.msra.mxu0 0.0
        %404 = vmatprep.subr.mxu0 0.0
        %405 = vmatpush1.msra.mxu0 0.0
        %406 = vmatprep.subr.mxu0 0.0
        %407 = vmatpush1.msra.mxu0 0.0
        %408 = vmatprep.subr.mxu0 0.0
        %409 = vmatpush1.msra.mxu0 0.0
        %410 = vmatprep.subr.mxu0 0.0
        %411 = vmatpush1.msra.mxu0 0.0
        %412 = vmatprep.subr.mxu0 0.0
        %413 = vmatpush1.msra.mxu0 0.0
        %414 = vmatprep.subr.mxu0 0.0
        %415 = vmatpush1.msra.mxu0 0.0
        %416 = vmatprep.subr.mxu0 0.0
        %417 = vmatpush1.msra.mxu0 0.0
        %418 = vmatprep.subr.mxu0 0.0
        %419 = vmatpush1.msra.mxu0 0.0
        %420 = vmatprep.subr.mxu0 0.0
        %421 = vmatpush1.msra.mxu0 0.0
        %422 = vmatprep.subr.mxu0 0.0
        %423 = vmatpush1.msra.mxu0 0.0
        %424 = vmatprep.subr.mxu0 0.0
        %425 = vmatpush1.msra.mxu0 0.0
        %426 = vmatprep.mubr.f32.mxu0 0.0
        %427 = vmatmul.mubr.f32.gmra.mrb[0].mxu0 %v357
        %v428 = vpop.f32.mrb[0].mxu0
        %v429 = vadd.f32 0.0, %v428
        %v430 = vpop.f32.mrb[0].mxu0
        %431 = vmatprep.mubr.f32.mxu0 0.0
        %432 = vmatmul.mubr.f32.gmra.mrb[0].mxu0 %v360
        %v433 = vpop.f32.mrb[0].mxu0
        %v434 = vadd.f32 0.0, %v433
        %v435 = vpop.f32.mrb[0].mxu0
        %436 = vdwg.mxu0
        %v437 = vmul.f32 %v429, 0.25
        %v438 = vmul.f32 %v434, 0.25
        %v439 = vld [vmem:[%s331] sm:$0xff]
        %v440 = vld [vmem:[%s331 + $0x8] sm:$0xff]
        %v441 = vld [vmem:[%s331 + $0x10] sm:$0xff]
        %v442 = vld [vmem:[%s331 + $0x18] sm:$0xff]
        %443 = vmatprep.subr.mxu0 0.0
        %444 = vmatpush1.msra.mxu0 %v439
        %445 = vmatprep.subr.mxu0 0.0
        %446 = vmatpush1.msra.mxu0 %v440
        %447 = vmatprep.subr.mxu0 0.0
        %448 = vmatpush1.msra.mxu0 %v441
        %449 = vmatprep.subr.mxu0 0.0
        %450 = vmatpush1.msra.mxu0 %v442
        %451 = vmatprep.subr.mxu0 0.0
        %452 = vmatpush1.msra.mxu0 0.0
        %453 = vmatprep.subr.mxu0 0.0
        %454 = vmatpush1.msra.mxu0 0.0
        %455 = vmatprep.subr.mxu0 0.0
        %456 = vmatpush1.msra.mxu0 0.0
        %457 = vmatprep.subr.mxu0 0.0
        %458 = vmatpush1.msra.mxu0 0.0
        %459 = vmatprep.subr.mxu0 0.0
        %460 = vmatpush1.msra.mxu0 0.0
        %461 = vmatprep.subr.mxu0 0.0
        %462 = vmatpush1.msra.mxu0 0.0
        %463 = vmatprep.subr.mxu0 0.0
        %464 = vmatpush1.msra.mxu0 0.0
        %465 = vmatprep.subr.mxu0 0.0
        %466 = vmatpush1.msra.mxu0 0.0
        %467 = vmatprep.subr.mxu0 0.0
        %468 = vmatpush1.msra.mxu0 0.0
        %469 = vmatprep.subr.mxu0 0.0
        %470 = vmatpush1.msra.mxu0 0.0
        %471 = vmatprep.subr.mxu0 0.0
        %472 = vmatpush1.msra.mxu0 0.0
        %473 = vmatprep.subr.mxu0 0.0
        %474 = vmatpush1.msra.mxu0 0.0
        %475 = vmatprep.subr.mxu0 0.0
        %476 = vmatpush1.msra.mxu0 0.0
        %477 = vmatprep.subr.mxu0 0.0
        %478 = vmatpush1.msra.mxu0 0.0
        %479 = vmatprep.subr.mxu0 0.0
        %480 = vmatpush1.msra.mxu0 0.0
        %481 = vmatprep.subr.mxu0 0.0
        %482 = vmatpush1.msra.mxu0 0.0
        %483 = vmatprep.subr.mxu0 0.0
        %484 = vmatpush1.msra.mxu0 0.0
        %485 = vmatprep.subr.mxu0 0.0
        %486 = vmatpush1.msra.mxu0 0.0
        %487 = vmatprep.subr.mxu0 0.0
        %488 = vmatpush1.msra.mxu0 0.0
        %489 = vmatprep.subr.mxu0 0.0
        %490 = vmatpush1.msra.mxu0 0.0
        %491 = vmatprep.subr.mxu0 0.0
        %492 = vmatpush1.msra.mxu0 0.0
        %493 = vmatprep.subr.mxu0 0.0
        %494 = vmatpush1.msra.mxu0 0.0
        %495 = vmatprep.subr.mxu0 0.0
        %496 = vmatpush1.msra.mxu0 0.0
        %497 = vmatprep.subr.mxu0 0.0
        %498 = vmatpush1.msra.mxu0 0.0
        %499 = vmatprep.subr.mxu0 0.0
        %500 = vmatpush1.msra.mxu0 0.0
        %501 = vmatprep.subr.mxu0 0.0
        %502 = vmatpush1.msra.mxu0 0.0
        %503 = vmatprep.subr.mxu0 0.0
        %504 = vmatpush1.msra.mxu0 0.0
        %505 = vmatprep.subr.mxu0 0.0
        %506 = vmatpush1.msra.mxu0 0.0
        %507 = vmatprep.mubr.f32.mxu0 0.0
        %508 = vmatmul.mubr.f32.gmra.mrb[0].mxu0 %v357
        %v509 = vpop.f32.mrb[0].mxu0
        %v510 = vadd.f32 0.0, %v509
        %v511 = vpop.f32.mrb[0].mxu0
        %512 = vmatprep.mubr.f32.mxu0 0.0
        %513 = vmatmul.mubr.f32.gmra.mrb[0].mxu0 %v360
        %v514 = vpop.f32.mrb[0].mxu0
        %v515 = vadd.f32 0.0, %v514
        %v516 = vpop.f32.mrb[0].mxu0
        %517 = vdwg.mxu0
        %v518 = vld [vmem:[%s336] sm:$0xff]
        %v519 = vld [vmem:[%s336 + $0x8] sm:$0xff]
        %v520 = vld [vmem:[%s336 + $0x10] sm:$0xff]
        %v521 = vld [vmem:[%s336 + $0x18] sm:$0xff]
        %522 = vmatprep.subr.mxu0 0.0
        %523 = vmatpush1.msra.mxu0 %v518
        %524 = vmatprep.subr.mxu0 0.0
        %525 = vmatpush1.msra.mxu0 %v519
        %526 = vmatprep.subr.mxu0 0.0
        %527 = vmatpush1.msra.mxu0 %v520
        %528 = vmatprep.subr.mxu0 0.0
        %529 = vmatpush1.msra.mxu0 %v521
        %530 = vmatprep.subr.mxu0 0.0
        %531 = vmatpush1.msra.mxu0 0.0
        %532 = vmatprep.subr.mxu0 0.0
        %533 = vmatpush1.msra.mxu0 0.0
        %534 = vmatprep.subr.mxu0 0.0
        %535 = vmatpush1.msra.mxu0 0.0
        %536 = vmatprep.subr.mxu0 0.0
        %537 = vmatpush1.msra.mxu0 0.0
        %538 = vmatprep.subr.mxu0 0.0
        %539 = vmatpush1.msra.mxu0 0.0
        %540 = vmatprep.subr.mxu0 0.0
        %541 = vmatpush1.msra.mxu0 0.0
        %542 = vmatprep.subr.mxu0 0.0
        %543 = vmatpush1.msra.mxu0 0.0
        %544 = vmatprep.subr.mxu0 0.0
        %545 = vmatpush1.msra.mxu0 0.0
        %546 = vmatprep.subr.mxu0 0.0
        %547 = vmatpush1.msra.mxu0 0.0
        %548 = vmatprep.subr.mxu0 0.0
        %549 = vmatpush1.msra.mxu0 0.0
        %550 = vmatprep.subr.mxu0 0.0
        %551 = vmatpush1.msra.mxu0 0.0
        %552 = vmatprep.subr.mxu0 0.0
        %553 = vmatpush1.msra.mxu0 0.0
        %554 = vmatprep.subr.mxu0 0.0
        %555 = vmatpush1.msra.mxu0 0.0
        %556 = vmatprep.subr.mxu0 0.0
        %557 = vmatpush1.msra.mxu0 0.0
        %558 = vmatprep.subr.mxu0 0.0
        %559 = vmatpush1.msra.mxu0 0.0
        %560 = vmatprep.subr.mxu0 0.0
        %561 = vmatpush1.msra.mxu0 0.0
        %562 = vmatprep.subr.mxu0 0.0
        %563 = vmatpush1.msra.mxu0 0.0
        %564 = vmatprep.subr.mxu0 0.0
        %565 = vmatpush1.msra.mxu0 0.0
        %566 = vmatprep.subr.mxu0 0.0
        %567 = vmatpush1.msra.mxu0 0.0
        %568 = vmatprep.subr.mxu0 0.0
        %569 = vmatpush1.msra.mxu0 0.0
        %570 = vmatprep.subr.mxu0 0.0
        %571 = vmatpush1.msra.mxu0 0.0
        %572 = vmatprep.subr.mxu0 0.0
        %573 = vmatpush1.msra.mxu0 0.0
        %574 = vmatprep.subr.mxu0 0.0
        %575 = vmatpush1.msra.mxu0 0.0
        %576 = vmatprep.subr.mxu0 0.0
        %577 = vmatpush1.msra.mxu0 0.0
        %578 = vmatprep.subr.mxu0 0.0
        %579 = vmatpush1.msra.mxu0 0.0
        %580 = vmatprep.subr.mxu0 0.0
        %581 = vmatpush1.msra.mxu0 0.0
        %582 = vmatprep.subr.mxu0 0.0
        %583 = vmatpush1.msra.mxu0 0.0
        %584 = vmatprep.subr.mxu0 0.0
        %585 = vmatpush1.msra.mxu0 0.0
        %586 = vmatprep.mubr.f32.mxu0 0.0
        %587 = vmatmul.mubr.f32.gmra.mrb[0].mxu0 %v357
        %v588 = vpop.f32.mrb[0].mxu0
        %v589 = vadd.f32 0.0, %v588
        %v590 = vpop.f32.mrb[0].mxu0
        %591 = vmatprep.mubr.f32.mxu0 0.0
        %592 = vmatmul.mubr.f32.gmra.mrb[0].mxu0 %v360
        %v593 = vpop.f32.mrb[0].mxu0
        %v594 = vadd.f32 0.0, %v593
        %v595 = vpop.f32.mrb[0].mxu0
        %596 = vdwg.mxu0
        %vm597 = vcmask 130048
        %v599 = vsel %vm597, %v437, 0
        %v602 = vsel %vm597, %v438, 0
        %v605 = vsel %vm597, %v510, 0
        %v608 = vsel %vm597, %v515, 0
        %610 = vmatprep.subr.mxu0 0.0
        %611 = vmatpush1.xpose.msra.mxu0 %v605
        %612 = vmatprep.subr.mxu0 0.0
        %613 = vmatpush1.xpose.msra.mxu0 %v608
        %614 = vmatprep.subr.mxu0 0.0
        %615 = vmatpush1.xpose.msra.mxu0 0.0
        %616 = vmatprep.subr.mxu0 0.0
        %617 = vmatpush1.xpose.msra.mxu0 0.0
        %618 = vmatprep.subr.mxu0 0.0
        %619 = vmatpush1.xpose.msra.mxu0 0.0
        %620 = vmatprep.subr.mxu0 0.0
        %621 = vmatpush1.xpose.msra.mxu0 0.0
        %622 = vmatprep.subr.mxu0 0.0
        %623 = vmatpush1.xpose.msra.mxu0 0.0
        %624 = vmatprep.subr.mxu0 0.0
        %625 = vmatpush1.xpose.msra.mxu0 0.0
        %626 = vmatprep.subr.mxu0 0.0
        %627 = vmatpush1.xpose.msra.mxu0 0.0
        %628 = vmatprep.subr.mxu0 0.0
        %629 = vmatpush1.xpose.msra.mxu0 0.0
        %630 = vmatprep.subr.mxu0 0.0
        %631 = vmatpush1.xpose.msra.mxu0 0.0
        %632 = vmatprep.subr.mxu0 0.0
        %633 = vmatpush1.xpose.msra.mxu0 0.0
        %634 = vmatprep.subr.mxu0 0.0
        %635 = vmatpush1.xpose.msra.mxu0 0.0
        %636 = vmatprep.subr.mxu0 0.0
        %637 = vmatpush1.xpose.msra.mxu0 0.0
        %638 = vmatprep.subr.mxu0 0.0
        %639 = vmatpush1.xpose.msra.mxu0 0.0
        %640 = vmatprep.subr.mxu0 0.0
        %641 = vmatpush1.xpose.msra.mxu0 0.0
        %642 = vmatprep.subr.mxu0 0.0
        %643 = vmatpush1.xpose.msra.mxu0 0.0
        %644 = vmatprep.subr.mxu0 0.0
        %645 = vmatpush1.xpose.msra.mxu0 0.0
        %646 = vmatprep.subr.mxu0 0.0
        %647 = vmatpush1.xpose.msra.mxu0 0.0
        %648 = vmatprep.subr.mxu0 0.0
        %649 = vmatpush1.xpose.msra.mxu0 0.0
        %650 = vmatprep.subr.mxu0 0.0
        %651 = vmatpush1.xpose.msra.mxu0 0.0
        %652 = vmatprep.subr.mxu0 0.0
        %653 = vmatpush1.xpose.msra.mxu0 0.0
        %654 = vmatprep.subr.mxu0 0.0
        %655 = vmatpush1.xpose.msra.mxu0 0.0
        %656 = vmatprep.subr.mxu0 0.0
        %657 = vmatpush1.xpose.msra.mxu0 0.0
        %658 = vmatprep.subr.mxu0 0.0
        %659 = vmatpush1.xpose.msra.mxu0 0.0
        %660 = vmatprep.subr.mxu0 0.0
        %661 = vmatpush1.xpose.msra.mxu0 0.0
        %662 = vmatprep.subr.mxu0 0.0
        %663 = vmatpush1.xpose.msra.mxu0 0.0
        %664 = vmatprep.subr.mxu0 0.0
        %665 = vmatpush1.xpose.msra.mxu0 0.0
        %666 = vmatprep.subr.mxu0 0.0
        %667 = vmatpush1.xpose.msra.mxu0 0.0
        %668 = vmatprep.subr.mxu0 0.0
        %669 = vmatpush1.xpose.msra.mxu0 0.0
        %670 = vmatprep.subr.mxu0 0.0
        %671 = vmatpush1.xpose.msra.mxu0 0.0
        %672 = vmatprep.subr.mxu0 0.0
        %673 = vmatpush1.xpose.msra.mxu0 0.0
        %674 = vmatprep.mubr.f32.mxu0 0.0
        %675 = vmatmul.mubr.f32.gmra.mrb[0].mxu0 %v599
        %v676 = vpop.f32.mrb[0].mxu0
        %v677 = vadd.f32 0.0, %v676
        %v678 = vpop.f32.mrb[0].mxu0
        %679 = vmatprep.mubr.f32.mxu0 0.0
        %680 = vmatmul.mubr.f32.gmra.mrb[0].mxu0 %v602
        %v681 = vpop.f32.mrb[0].mxu0
        %v682 = vadd.f32 0.0, %v681
        %v683 = vpop.f32.mrb[0].mxu0
        %684 = vdwg.mxu0
        %v685 = vsel %vm597, %v677, -inf
        %686 = vmax.xlane.f32.xlu0 %v685
        %v687 = vpop.xlane.xlu0 %686
        %v688 = vsel %vm597, %v682, -inf
        %689 = vmax.xlane.f32.xlu0 %v688
        %v690 = vpop.xlane.xlu0 %689
        %v691 = vsub.f32 %v677, %v687
        %v692 = vsub.f32 %v682, %v690
        %v693 = vmul.f32 %v691, 1.442695
        %v694 = vpow.pop %v693
        %v695 = vmul.f32 %v692, 1.442695
        %v696 = vpow.pop %v695
        %v697 = vsel %vm597, %v694, 0.0
        %698 = vadd.xlane.f32.xlu0 %v697
        %v699 = vpop.xlane.xlu0 %698
        %v700 = vsel %vm597, %v696, 0.0
        %701 = vadd.xlane.f32.xlu0 %v700
        %v702 = vpop.xlane.xlu0 %701
        %v703 = vrcp.pop %v699
        %v704 = vmul.f32 %v694, %v703
        %v705 = vrcp.pop %v702
        %v706 = vmul.f32 %v696, %v705
        %v708 = vsel %vm597, %v704, 0
        %v711 = vsel %vm597, %v706, 0
        %713 = vmatprep.subr.mxu0 0.0
        %714 = vmatpush1.msra.mxu0 %v589
        %715 = vmatprep.subr.mxu0 0.0
        %716 = vmatpush1.msra.mxu0 %v594
        %717 = vmatprep.subr.mxu0 0.0
        %718 = vmatpush1.msra.mxu0 0.0
        %719 = vmatprep.subr.mxu0 0.0
        %720 = vmatpush1.msra.mxu0 0.0
        %721 = vmatprep.subr.mxu0 0.0
        %722 = vmatpush1.msra.mxu0 0.0
        %723 = vmatprep.subr.mxu0 0.0
        %724 = vmatpush1.msra.mxu0 0.0
        %725 = vmatprep.subr.mxu0 0.0
        %726 = vmatpush1.msra.mxu0 0.0
        %727 = vmatprep.subr.mxu0 0.0
        %728 = vmatpush1.msra.mxu0 0.0
        %729 = vmatprep.subr.mxu0 0.0
        %730 = vmatpush1.msra.mxu0 0.0
        %731 = vmatprep.subr.mxu0 0.0
        %732 = vmatpush1.msra.mxu0 0.0
        %733 = vmatprep.subr.mxu0 0.0
        %734 = vmatpush1.msra.mxu0 0.0
        %735 = vmatprep.subr.mxu0 0.0
        %736 = vmatpush1.msra.mxu0 0.0
        %737 = vmatprep.subr.mxu0 0.0
        %738 = vmatpush1.msra.mxu0 0.0
        %739 = vmatprep.subr.mxu0 0.0
        %740 = vmatpush1.msra.mxu0 0.0
        %741 = vmatprep.subr.mxu0 0.0
        %742 = vmatpush1.msra.mxu0 0.0
        %743 = vmatprep.subr.mxu0 0.0
        %744 = vmatpush1.msra.mxu0 0.0
        %745 = vmatprep.subr.mxu0 0.0
        %746 = vmatpush1.msra.mxu0 0.0
        %747 = vmatprep.subr.mxu0 0.0
        %748 = vmatpush1.msra.mxu0 0.0
        %749 = vmatprep.subr.mxu0 0.0
        %750 = vmatpush1.msra.mxu0 0.0
        %751 = vmatprep.subr.mxu0 0.0
        %752 = vmatpush1.msra.mxu0 0.0
        %753 = vmatprep.subr.mxu0 0.0
        %754 = vmatpush1.msra.mxu0 0.0
        %755 = vmatprep.subr.mxu0 0.0
        %756 = vmatpush1.msra.mxu0 0.0
        %757 = vmatprep.subr.mxu0 0.0
        %758 = vmatpush1.msra.mxu0 0.0
        %759 = vmatprep.subr.mxu0 0.0
        %760 = vmatpush1.msra.mxu0 0.0
        %761 = vmatprep.subr.mxu0 0.0
        %762 = vmatpush1.msra.mxu0 0.0
        %763 = vmatprep.subr.mxu0 0.0
        %764 = vmatpush1.msra.mxu0 0.0
        %765 = vmatprep.subr.mxu0 0.0
        %766 = vmatpush1.msra.mxu0 0.0
        %767 = vmatprep.subr.mxu0 0.0
        %768 = vmatpush1.msra.mxu0 0.0
        %769 = vmatprep.subr.mxu0 0.0
        %770 = vmatpush1.msra.mxu0 0.0
        %771 = vmatprep.subr.mxu0 0.0
        %772 = vmatpush1.msra.mxu0 0.0
        %773 = vmatprep.subr.mxu0 0.0
        %774 = vmatpush1.msra.mxu0 0.0
        %775 = vmatprep.subr.mxu0 0.0
        %776 = vmatpush1.msra.mxu0 0.0
        %777 = vmatprep.mubr.f32.mxu0 0.0
        %778 = vmatmul.mubr.f32.gmra.mrb[0].mxu0 %v708
        %v779 = vpop.f32.mrb[0].mxu0
        %v780 = vadd.f32 0.0, %v779
        %v781 = vpop.f32.mrb[0].mxu0
        %782 = vmatprep.mubr.f32.mxu0 0.0
        %783 = vmatmul.mubr.f32.gmra.mrb[0].mxu0 %v711
        %v784 = vpop.f32.mrb[0].mxu0
        %v785 = vadd.f32 0.0, %v784
        %v786 = vpop.f32.mrb[0].mxu0
        %787 = vdwg.mxu0
        %v788 = vld [vmem:[#allocation2] sm:$0xff]
        %v789 = vld [vmem:[#allocation2 + $0x8] sm:$0xff]
        %v790 = vld [vmem:[%s341] sm:$0xff]
        %v791 = vld [vmem:[%s341 + $0x8] sm:$0xff]
        %v793 = vsel %vm597, %v780, 0
        %v796 = vsel %vm597, %v785, 0
        %798 = vmatprep.subr.mxu0 0.0
        %799 = vmatpush1.msra.mxu0 %v790
        %800 = vmatprep.subr.mxu0 0.0
        %801 = vmatpush1.msra.mxu0 %v791
        %802 = vmatprep.subr.mxu0 0.0
        %803 = vmatpush1.msra.mxu0 0.0
        %804 = vmatprep.subr.mxu0 0.0
        %805 = vmatpush1.msra.mxu0 0.0
        %806 = vmatprep.subr.mxu0 0.0
        %807 = vmatpush1.msra.mxu0 0.0
        %808 = vmatprep.subr.mxu0 0.0
        %809 = vmatpush1.msra.mxu0 0.0
        %810 = vmatprep.subr.mxu0 0.0
        %811 = vmatpush1.msra.mxu0 0.0
        %812 = vmatprep.subr.mxu0 0.0
        %813 = vmatpush1.msra.mxu0 0.0
        %814 = vmatprep.subr.mxu0 0.0
        %815 = vmatpush1.msra.mxu0 0.0
        %816 = vmatprep.subr.mxu0 0.0
        %817 = vmatpush1.msra.mxu0 0.0
        %818 = vmatprep.subr.mxu0 0.0
        %819 = vmatpush1.msra.mxu0 0.0
        %820 = vmatprep.subr.mxu0 0.0
        %821 = vmatpush1.msra.mxu0 0.0
        %822 = vmatprep.subr.mxu0 0.0
        %823 = vmatpush1.msra.mxu0 0.0
        %824 = vmatprep.subr.mxu0 0.0
        %825 = vmatpush1.msra.mxu0 0.0
        %826 = vmatprep.subr.mxu0 0.0
        %827 = vmatpush1.msra.mxu0 0.0
        %828 = vmatprep.subr.mxu0 0.0
        %829 = vmatpush1.msra.mxu0 0.0
        %830 = vmatprep.subr.mxu0 0.0
        %831 = vmatpush1.msra.mxu0 0.0
        %832 = vmatprep.subr.mxu0 0.0
        %833 = vmatpush1.msra.mxu0 0.0
        %834 = vmatprep.subr.mxu0 0.0
        %835 = vmatpush1.msra.mxu0 0.0
        %836 = vmatprep.subr.mxu0 0.0
        %837 = vmatpush1.msra.mxu0 0.0
        %838 = vmatprep.subr.mxu0 0.0
        %839 = vmatpush1.msra.mxu0 0.0
        %840 = vmatprep.subr.mxu0 0.0
        %841 = vmatpush1.msra.mxu0 0.0
        %842 = vmatprep.subr.mxu0 0.0
        %843 = vmatpush1.msra.mxu0 0.0
        %844 = vmatprep.subr.mxu0 0.0
        %845 = vmatpush1.msra.mxu0 0.0
        %846 = vmatprep.subr.mxu0 0.0
        %847 = vmatpush1.msra.mxu0 0.0
        %848 = vmatprep.subr.mxu0 0.0
        %849 = vmatpush1.msra.mxu0 0.0
        %850 = vmatprep.subr.mxu0 0.0
        %851 = vmatpush1.msra.mxu0 0.0
        %852 = vmatprep.subr.mxu0 0.0
        %853 = vmatpush1.msra.mxu0 0.0
        %854 = vmatprep.subr.mxu0 0.0
        %855 = vmatpush1.msra.mxu0 0.0
        %856 = vmatprep.subr.mxu0 0.0
        %857 = vmatpush1.msra.mxu0 0.0
        %858 = vmatprep.subr.mxu0 0.0
        %859 = vmatpush1.msra.mxu0 0.0
        %860 = vmatprep.subr.mxu0 0.0
        %861 = vmatpush1.msra.mxu0 0.0
        %862 = vmatprep.mubr.f32.mxu0 0.0
        %863 = vmatmul.mubr.f32.gmra.mrb[0].mxu0 %v793
        %v864 = vpop.f32.mrb[0].mxu0
        %v865 = vadd.f32 0.0, %v864
        %v866 = vpop.f32.mrb[0].mxu0
        %867 = vmatprep.mubr.f32.mxu0 0.0
        %868 = vmatmul.mubr.f32.gmra.mrb[0].mxu0 %v796
        %v869 = vpop.f32.mrb[0].mxu0
        %v870 = vadd.f32 0.0, %v869
        %v871 = vpop.f32.mrb[0].mxu0
        %872 = vdwg.mxu0
        %v873 = vadd.f32 %v788, %v865
        %v874 = vadd.f32 %v789, %v870
        %875 = vst.msk [vmem:[#allocation2] sm:$0xff] %vm355, %v873
        %876 = vst.msk [vmem:[#allocation2 + $0x8] sm:$0xff] %vm355, %v874
        %p877 = scmp.eq.s32.totalorder %s25, 7
        // Predicated region
        $region49: #{attention_forward.1} parent=43 // pred_check
          %p878 = pneg %p877
        $region50: #{attention_forward.1} parent=43 // pred_check_branch
          %880 = sbr.rel (%p878) target = $region52
        $region51: #{attention_forward.1} parent=43 // pred_region
          %v881 = vld [vmem:[#allocation2] sm:$0xff]
          %v882 = vld [vmem:[#allocation2 + $0x8] sm:$0xff]
          %v883 = vld [vmem:[%s5] sm:$0x1]
          %v885 = vlaneseq
          %v886 = vshrl.u32 %v885, 7
          %v887 = vsub.s32 0, %v886
          %v888 = vrot.slane %v883, %v887
          %v890 = vadd.f32 %v881, %v888
          %v891 = vadd.f32 %v882, %v888
          %892 = vst.msk [vmem:[%s316] sm:$0xff] %vm355, %v890
          %893 = vst.msk [vmem:[%s316 + $0x8] sm:$0xff] %vm355, %v891
        $region52: #{attention_forward.1} parent=43 // pred_fallthru
          _
        %s894 = sand.u32 %s191, 1
        %s895 = scalar_lea.sflag [#allocation4], %s894
        %s896 = sand.u32 %s191, 1
        %s897 = smul.addr %s896, 16
        %s898 = scalar_lea.vmem [#allocation3], %s897
        // Predicated region
        $region53: #{attention_forward.1} parent=43 // pred_check
          %p899 = pneg %p201
        $region54: #{attention_forward.1} parent=43 // pred_check_branch
          %901 = sbr.rel (%p899) target = $region56
        $region55: #{attention_forward.1} parent=43 // pred_region
          %s903 = ssub.s32 256, 256
          %904 = vsyncadd %s895, %s903
          %s905 = smul.addr %s24, 2
          %s906 = smul.addr %s905, 128
          %s907 = scalar_lea.hbm %s6, %s906
          %s908 = sshll.u32 %s898, 4
          %s909 = int_to_ptr.vmem [resolvable:$true] %s908
          %914 = dma.vmem_to_hbm [thread:$0]  %s909, 256, %s907, %s895, 128, 128, 8
        $region56: #{attention_forward.1} parent=43 // pred_fallthru
          _
      $region44: #{attention_forward.1} parent=5 // pred_fallthru
        _
      %p915 = scmp.le.s32.totalorder 2, %s15
      // Predicated region
      $region57: #{attention_forward.1} parent=5 // pred_check
        %p916 = pneg %p915
      $region58: #{attention_forward.1} parent=5 // pred_check_branch
        %918 = sbr.rel (%p916) target = $region60
      $region59: #{attention_forward.1} parent=5 // pred_region
        %s919 = ssub.s32 %s15, 2
        // Predicated region
        $region61: #{attention_forward.1} parent=59 // pred_check
          %p920 = pneg %p207
        $region62: #{attention_forward.1} parent=59 // pred_check_branch
          %922 = sbr.rel (%p920) target = $region64
        $region63: #{attention_forward.1} parent=59 // pred_region
          %s923 = sand.u32 %s192, 1
          %s924 = scalar_lea.sflag [#allocation4], %s923
          %s925 = sand.u32 %s192, 1
          %s926 = smul.addr %s925, 16
          %s927 = scalar_lea.vmem [#allocation3], %s926
          %928 = dma.done %s924, 256
        $region64: #{attention_forward.1} parent=59 // pred_fallthru
          _
      $region60: #{attention_forward.1} parent=5 // pred_fallthru
        _
    $region6: #{attention_forward.1} parent=1 // loop_footer
      %s19 = sadd.s32 1, %s15
    $region7: #{attention_forward.1} parent=1 // loop_footer_branch
      %14 = sbr.rel target = $region3
    $region8: #{attention_forward.1} parent=1 // loop_exit
      _
    %929 = vsyncpa [#allocation4], 1
    %s930 = scalar_lea.sflag [#allocation4], 1
    %931 = vsyncpa %s930, 1

</llo_original>
